<compile_context>
chip_gen: v6e
topology: v6e:2x2x1
jax: 0.10.0
libtpu: 0.0.40
codegen_flags: <defaults>
</compile_context>

<pallas_src>
import jax
import jax.numpy as jnp
from jax.experimental import pallas as pl
from jax.experimental.pallas import tpu as pltpu


def _round_up(n, m):
    return ((n + m - 1) // m) * m


def highway_kernel(x_ref, w_ref, b_ref, o_ref):
    tn = o_ref.shape[-1]                  # static N-tile width (multiple of 128)
    j = pl.program_id(1)

    x = x_ref[...]                        # (bb, Ep), original dtype

    # bf16 operands into the MXU, f32 accumulation.
    z = jnp.dot(x.astype(jnp.bfloat16), w_ref[...],
                preferred_element_type=jnp.float32)          # (bb, 2*tn)
    z = z + b_ref[...].astype(jnp.float32)                   # (1, 2*tn) broadcast

    proj = jnp.maximum(z[:, :tn], 0.0)    # relu branch   (f32 VPU)
    gate = jax.nn.sigmoid(z[:, tn:])      # gate branch   (f32 EUP)

    # Columns of x matching this N tile (aligned to a 128-lane boundary).
    col0 = pl.multiple_of(j * tn, 128)
    x_t = x_ref[:, pl.ds(col0, tn)].astype(jnp.float32)

    # gate*proj + (1-gate)*x  ==  x + gate*(proj - x)
    o_ref[...] = (x_t + gate * (proj - x_t)).astype(o_ref.dtype)


def make_highway_params(w_proj, b_proj, w_gate, b_gate, *,
                        weight_dtype=jnp.bfloat16, tile_n=None):
    """One-time fusion/layout of the PyTorch-layout parameters.

    w_*: (E, E) as in nn.Linear (out, in); b_*: (E,).
    Returns (w_fused, b_fused, E, Ep, tn) where
      Ep      = E rounded up to a multiple of 128,
      tn      = output N-tile width (multiple of 128, divides Ep),
      w_fused = (Ep, 2*Ep) in weight_dtype, per-tile layout [Wp_j | Wg_j],
      b_fused = (1, 2*Ep) f32, matching layout.
    Call once at parameter-init / checkpoint-load time, not per forward.
    """
    w_proj = jnp.asarray(w_proj, jnp.float32)
    w_gate = jnp.asarray(w_gate, jnp.float32)
    b_proj = jnp.asarray(b_proj, jnp.float32)
    b_gate = jnp.asarray(b_gate, jnp.float32)

    E = w_proj.shape[0]
    Ep = _round_up(E, 128)

    if tile_n is None:
        tile_n = 512 if Ep % 512 == 0 else (256 if Ep % 256 == 0 else 128)
    assert Ep % tile_n == 0 and tile_n % 128 == 0
    n_tiles = Ep // tile_n

    pad = Ep - E
    # (in, out) layout, zero-padded to (Ep, Ep); padded lanes produce 0 output.
    wp = jnp.pad(w_proj.T, ((0, pad), (0, pad)))
    wg = jnp.pad(w_gate.T, ((0, pad), (0, pad)))
    bp = jnp.pad(b_proj, (0, pad))
    bg = jnp.pad(b_gate, (0, pad))

    # Interleave proj/gate per N-tile: [Wp_0 | Wg_0 | Wp_1 | Wg_1 | ...]
    w_fused = jnp.concatenate(
        [wp.reshape(Ep, n_tiles, tile_n), wg.reshape(Ep, n_tiles, tile_n)],
        axis=2).reshape(Ep, 2 * Ep).astype(weight_dtype)
    b_fused = jnp.concatenate(
        [bp.reshape(n_tiles, tile_n), bg.reshape(n_tiles, tile_n)],
        axis=1).reshape(1, 2 * Ep).astype(jnp.float32)
    return w_fused, b_fused, E, Ep, tile_n


def highway_forward(x, params, *, block_b=1024):
    """x: (B, E). params: output of make_highway_params."""
    w_fused, b_fused, E, Ep, tn = params
    B = x.shape[0]
    assert x.shape == (B, E)
    assert w_fused.shape == (Ep, 2 * Ep) and b_fused.shape == (1, 2 * Ep)

    x_in = jnp.pad(x, ((0, 0), (0, Ep - E))) if Ep != E else x

    # Batch tile: multiple of 8, aim for >= 2 grid steps (v7x has 2 TCs),
    # capped by block_b for VMEM / pipeline granularity.
    if B <= 8:
        bb = B
    else:
        bb = min(block_b, _round_up(pl.cdiv(B, 2), 8))
    nb = pl.cdiv(B, bb)
    nn = Ep // tn
    grid = (nb, nn)

    # VMEM budget: weight + bias buffers + double-buffered x and out tiles.
    x_item = jnp.dtype(x.dtype).itemsize
    w_bufs = 1 if nn == 1 else 2
    need = (w_bufs * Ep * 2 * tn * jnp.dtype(w_fused.dtype).itemsize
            + w_bufs * 2 * tn * 4
            + 2 * bb * Ep * x_item
            + 2 * bb * tn * x_item)
    vmem_limit = int(min(max(int(1.5 * need) + (4 << 20), 32 << 20), 128 << 20))

    out_shape = jax.ShapeDtypeStruct((B, Ep), x.dtype)
    compiler_params = pltpu.CompilerParams(
        dimension_semantics=("parallel", "parallel"),
        vmem_limit_bytes=vmem_limit)

    def _run(weight_mode):
        grid_spec = pltpu.PrefetchScalarGridSpec(
            num_scalar_prefetch=0,
            grid=grid,
            in_specs=[
                pl.BlockSpec((bb, Ep), lambda i, j: (i, 0)),      # x (batch tile)
                pl.BlockSpec((Ep, 2 * tn), lambda i, j: (0, j),
                             pipeline_mode=weight_mode),          # W_fused
                pl.BlockSpec((1, 2 * tn), lambda i, j: (0, j),
                             pipeline_mode=weight_mode),          # b_fused
            ],
            out_specs=pl.BlockSpec((bb, tn), lambda i, j: (i, j)),
        )
        return pl.pallas_call(
            highway_kernel,
            out_shape=out_shape,
            grid_spec=grid_spec,
            compiler_params=compiler_params,
        )(x_in, w_fused, b_fused)

    if nn == 1:
        # Constant-index weight/bias: single-buffer to halve resident VMEM
        # (matters on v7x's 64 MiB). Fall back to default double-buffering if
        # this jax version rejects pipeline_mode on pallas_call BlockSpecs.
        try:
            out = _run(pl.Buffered(1))
        except Exception:
            out = _run(None)
    else:
        out = _run(None)

    return out[:, :E] if Ep != E else out


def highway_ref(x, w_proj, b_proj, w_gate, b_gate):
    """Pure-JAX reference mirroring the PyTorch forward (f32 throughout)."""
    proj = jax.nn.relu(x @ w_proj.T + b_proj)
    gate = jax.nn.sigmoid(x @ w_gate.T + b_gate)
    return gate * proj + (1.0 - gate) * x


if __name__ == "__main__":
    # Small shapes consistent with the module: batch=8, word_embed_size=32.
    B, E = 8, 32
    key = jax.random.PRNGKey(0)
    k_x, k_wp, k_bp, k_wg, k_bg = jax.random.split(key, 5)

    # Deterministic init mimicking nn.Linear default: U(-1/sqrt(E), 1/sqrt(E)).
    bound = 1.0 / jnp.sqrt(jnp.float32(E))
    x = jax.random.normal(k_x, (B, E), dtype=jnp.float32)
    w_proj = jax.random.uniform(k_wp, (E, E), jnp.float32, -bound, bound)
    b_proj = jax.random.uniform(k_bp, (E,), jnp.float32, -bound, bound)
    w_gate = jax.random.uniform(k_wg, (E, E), jnp.float32, -bound, bound)
    b_gate = jax.random.uniform(k_bg, (E,), jnp.float32, -bound, bound)

    # One-time parameter fusion (transpose + concat + pad + bf16 cast).
    params = make_highway_params(w_proj, b_proj, w_gate, b_gate)

    out = highway_forward(x, params)
    out = jax.block_until_ready(out)

    ref = highway_ref(x, w_proj, b_proj, w_gate, b_gate)
    assert out.shape == (B, E) and out.dtype == x.dtype
    # Loose tolerance: the matmul operands are bf16 (MXU-native) with f32
    # accumulation; the f32 reference differs by O(bf16 rounding).
    assert jnp.allclose(out, ref, atol=5e-2, rtol=5e-2), "mismatch vs reference"

    print("KERNEL_OK")
</pallas_src>

<mosaic_0001>
module attributes {stable_mosaic.version = 11 : i64} {
  func.func @highway_kernel(%arg0: i32, %arg1: i32, %arg2: memref<8x128xf32, #tpu.memory_space<vmem>>, %arg3: memref<128x256xbf16, #tpu.memory_space<vmem>>, %arg4: memref<1x256xf32, #tpu.memory_space<vmem>>, %arg5: memref<8x128xf32, #tpu.memory_space<vmem>>) attributes {dimension_semantics = [#tpu.dimension_semantics<parallel>, #tpu.dimension_semantics<parallel>], iteration_bounds = array<i64: 1, 1>, scalar_prefetch = 0 : i64, scratch_operands = 0 : i64, tpu.core_type = #tpu.core_type<tc>, window_params = [{transform_indices = @transform_0, window_bounds = array<i64: 8, 128>}, {pipeline_mode = #tpu.pipeline_mode<synchronous>, transform_indices = @transform_1, window_bounds = array<i64: 128, 256>}, {pipeline_mode = #tpu.pipeline_mode<synchronous>, transform_indices = @transform_2, window_bounds = array<i64: 1, 256>}, {transform_indices = @transform_3, window_bounds = array<i64: 8, 128>}]} {
    %c0 = arith.constant 0 : index
    %c0_0 = arith.constant 0 : index
    %0 = vector.load %arg2[%c0, %c0_0] : memref<8x128xf32, #tpu.memory_space<vmem>>, vector<8x128xf32>
    %1 = arith.truncf %0 : vector<8x128xf32> to vector<8x128xbf16>
    %c0_1 = arith.constant 0 : index
    %c0_2 = arith.constant 0 : index
    %2 = vector.load %arg3[%c0_1, %c0_2] : memref<128x256xbf16, #tpu.memory_space<vmem>>, vector<128x256xbf16>
    %cst = arith.constant dense<0.000000e+00> : vector<8x256xf32>
    %3 = tpu.matmul %1, %2, %cst {dimension_numbers = #tpu.dot_dimension_numbers<[1], [0], [0], [1], [0, 0, 1, 1], [], []>} : vector<8x128xbf16>, vector<128x256xbf16>, vector<8x256xf32> -> vector<8x256xf32>
    %c0_3 = arith.constant 0 : index
    %c0_4 = arith.constant 0 : index
    %4 = vector.load %arg4[%c0_3, %c0_4] : memref<1x256xf32, #tpu.memory_space<vmem>>, vector<1x256xf32>
    %5 = vector.broadcast %4 : vector<1x256xf32> to vector<8x256xf32>
    %6 = arith.addf %3, %5 : vector<8x256xf32>
    %7 = vector.extract_strided_slice %6 {offsets = [0, 0], sizes = [8, 128], strides = [1, 1]} : vector<8x256xf32> to vector<8x128xf32>
    %cst_5 = arith.constant 0.000000e+00 : f32
    %8 = vector.broadcast %cst_5 : f32 to vector<8x128xf32>
    %9 = arith.maximumf %7, %8 : vector<8x128xf32>
    %10 = vector.extract_strided_slice %6 {offsets = [0, 128], sizes = [8, 128], strides = [1, 1]} : vector<8x256xf32> to vector<8x128xf32>
    %11 = arith.negf %10 : vector<8x128xf32>
    %12 = math.exp %11 : vector<8x128xf32>
    %cst_6 = arith.constant 1.000000e+00 : f32
    %13 = vector.broadcast %cst_6 : f32 to vector<8x128xf32>
    %14 = arith.addf %13, %12 : vector<8x128xf32>
    %15 = arith.divf %13, %14 : vector<8x128xf32>
    %c128_i32 = arith.constant 128 : i32
    %16 = arith.muli %arg1, %c128_i32 : i32
    %17 = tpu.assume_multiple %16, 128 : i32
    %c0_7 = arith.constant 0 : index
    %18 = arith.index_cast %17 : i32 to index
    %19 = vector.load %arg2[%c0_7, %18] : memref<8x128xf32, #tpu.memory_space<vmem>>, vector<8x128xf32>
    %20 = arith.subf %9, %19 : vector<8x128xf32>
    %21 = arith.mulf %15, %20 : vector<8x128xf32>
    %22 = arith.addf %19, %21 : vector<8x128xf32>
    %c0_8 = arith.constant 0 : index
    %c0_9 = arith.constant 0 : index
    %23 = vector.load %arg5[%c0_8, %c0_9] : memref<8x128xf32, #tpu.memory_space<vmem>>, vector<8x128xf32>
    tpu.vector_store %arg5[%c0_8, %c0_9], %22 {strides = array<i32>} : memref<8x128xf32, #tpu.memory_space<vmem>>, vector<8x128xf32>,
    return
  }
  func.func @transform_0(%arg0: i32, %arg1: i32) -> (i32, i32) {
    %c0_i32 = arith.constant 0 : i32
    %c0_i32_0 = arith.constant 0 : i32
    return %arg0, %c0_i32 : i32, i32
  }
  func.func @transform_1(%arg0: i32, %arg1: i32) -> (i32, i32) {
    %c0_i32 = arith.constant 0 : i32
    %c0_i32_0 = arith.constant 0 : i32
    return %c0_i32, %arg1 : i32, i32
  }
  func.func @transform_2(%arg0: i32, %arg1: i32) -> (i32, i32) {
    %c0_i32 = arith.constant 0 : i32
    %c0_i32_0 = arith.constant 0 : i32
    return %c0_i32, %arg1 : i32, i32
  }
  func.func @transform_3(%arg0: i32, %arg1: i32) -> (i32, i32) {
    %c0_i32 = arith.constant 0 : i32
    return %arg0, %arg1 : i32, i32
  }
}

module attributes {stable_mosaic.version = 11 : i64} {
  func.func @highway_kernel(%arg0: i32, %arg1: i32, %arg2: memref<8x128xf32, #tpu.memory_space<vmem>>, %arg3: memref<128x256xbf16, #tpu.memory_space<vmem>>, %arg4: memref<1x256xf32, #tpu.memory_space<vmem>>, %arg5: memref<8x128xf32, #tpu.memory_space<vmem>>) attributes {dimension_semantics = [#tpu.dimension_semantics<parallel>, #tpu.dimension_semantics<parallel>], iteration_bounds = array<i64: 1, 1>, scalar_prefetch = 0 : i64, scratch_operands = 0 : i64, tpu.core_type = #tpu.core_type<tc>, window_params = [{transform_indices = @transform_0, window_bounds = array<i64: 8, 128>}, {transform_indices = @transform_1, window_bounds = array<i64: 128, 256>}, {transform_indices = @transform_2, window_bounds = array<i64: 1, 256>}, {transform_indices = @transform_3, window_bounds = array<i64: 8, 128>}]} {
    %c0 = arith.constant 0 : index
    %c0_0 = arith.constant 0 : index
    %0 = vector.load %arg2[%c0, %c0_0] : memref<8x128xf32, #tpu.memory_space<vmem>>, vector<8x128xf32>
    %1 = arith.truncf %0 : vector<8x128xf32> to vector<8x128xbf16>
    %c0_1 = arith.constant 0 : index
    %c0_2 = arith.constant 0 : index
    %2 = vector.load %arg3[%c0_1, %c0_2] : memref<128x256xbf16, #tpu.memory_space<vmem>>, vector<128x256xbf16>
    %cst = arith.constant dense<0.000000e+00> : vector<8x256xf32>
    %3 = tpu.matmul %1, %2, %cst {dimension_numbers = #tpu.dot_dimension_numbers<[1], [0], [0], [1], [0, 0, 1, 1], [], []>} : vector<8x128xbf16>, vector<128x256xbf16>, vector<8x256xf32> -> vector<8x256xf32>
    %c0_3 = arith.constant 0 : index
    %c0_4 = arith.constant 0 : index
    %4 = vector.load %arg4[%c0_3, %c0_4] : memref<1x256xf32, #tpu.memory_space<vmem>>, vector<1x256xf32>
    %5 = vector.broadcast %4 : vector<1x256xf32> to vector<8x256xf32>
    %6 = arith.addf %3, %5 : vector<8x256xf32>
    %7 = vector.extract_strided_slice %6 {offsets = [0, 0], sizes = [8, 128], strides = [1, 1]} : vector<8x256xf32> to vector<8x128xf32>
    %cst_5 = arith.constant 0.000000e+00 : f32
    %8 = vector.broadcast %cst_5 : f32 to vector<8x128xf32>
    %9 = arith.maximumf %7, %8 : vector<8x128xf32>
    %10 = vector.extract_strided_slice %6 {offsets = [0, 128], sizes = [8, 128], strides = [1, 1]} : vector<8x256xf32> to vector<8x128xf32>
    %11 = arith.negf %10 : vector<8x128xf32>
    %12 = math.exp %11 : vector<8x128xf32>
    %cst_6 = arith.constant 1.000000e+00 : f32
    %13 = vector.broadcast %cst_6 : f32 to vector<8x128xf32>
    %14 = arith.addf %13, %12 : vector<8x128xf32>
    %15 = arith.divf %13, %14 : vector<8x128xf32>
    %c128_i32 = arith.constant 128 : i32
    %16 = arith.muli %arg1, %c128_i32 : i32
    %17 = tpu.assume_multiple %16, 128 : i32
    %c0_7 = arith.constant 0 : index
    %18 = arith.index_cast %17 : i32 to index
    %19 = vector.load %arg2[%c0_7, %18] : memref<8x128xf32, #tpu.memory_space<vmem>>, vector<8x128xf32>
    %20 = arith.subf %9, %19 : vector<8x128xf32>
    %21 = arith.mulf %15, %20 : vector<8x128xf32>
    %22 = arith.addf %19, %21 : vector<8x128xf32>
    %c0_8 = arith.constant 0 : index
    %c0_9 = arith.constant 0 : index
    %23 = vector.load %arg5[%c0_8, %c0_9] : memref<8x128xf32, #tpu.memory_space<vmem>>, vector<8x128xf32>
    tpu.vector_store %arg5[%c0_8, %c0_9], %22 {strides = array<i32>} : memref<8x128xf32, #tpu.memory_space<vmem>>, vector<8x128xf32>,
    return
  }
  func.func @transform_0(%arg0: i32, %arg1: i32) -> (i32, i32) {
    %c0_i32 = arith.constant 0 : i32
    %c0_i32_0 = arith.constant 0 : i32
    return %arg0, %c0_i32 : i32, i32
  }
  func.func @transform_1(%arg0: i32, %arg1: i32) -> (i32, i32) {
    %c0_i32 = arith.constant 0 : i32
    %c0_i32_0 = arith.constant 0 : i32
    return %c0_i32, %arg1 : i32, i32
  }
  func.func @transform_2(%arg0: i32, %arg1: i32) -> (i32, i32) {
    %c0_i32 = arith.constant 0 : i32
    %c0_i32_0 = arith.constant 0 : i32
    return %c0_i32, %arg1 : i32, i32
  }
  func.func @transform_3(%arg0: i32, %arg1: i32) -> (i32, i32) {
    %c0_i32 = arith.constant 0 : i32
    return %arg0, %arg1 : i32, i32
  }
}

</mosaic_0001>

<llo_original>
// kernel: tpu_custom_call.1
$region0: #{tpu_custom_call.1}
  #allocation0 [shape = 'u32[]', space=smem, size = 0x4, offset = 0x4, fixed_abs, tag = 'smem constant byte address 0x4 - core index']
  #allocation1 [shape = 'u32[144,128]{1,0:T(1,128)}', space=vmem, size = 0x12000, scoped, tag = 'internal scratch']
  %s0 = inlined_call_operand.hbm [shape: f32[8,128], index: 0, kind: input, shape index: {}]
  %s1 = inlined_call_operand.hbm [shape: bf16[128,256], index: 1, kind: input, shape index: {}]
  %s2 = inlined_call_operand.vmem [shape: f32[1,256], index: 2, kind: input, shape index: {}]
  %s3 = inlined_call_operand.hbm [shape: f32[8,128], index: 3, kind: output, shape index: {}]
  %s4 = sld [smem:[#allocation0]]
  $region30: #{tpu_custom_call.1} parent=0
    _
  %s6 = ssub.s32 1, %s4
  %s7 = scalar_select 0, %s6, %s4
  $region1: #{tpu_custom_call.1} parent=0
    #allocation2 [shape = 'u8[4096]{0}', space=vmem, size = 0x1000, scoped, tag = 'input window, operand 0, single buffered']
    #allocation3 [shape = 's32[1]{0}', space=sflag, size = 0x4, scoped, tag = 'scoped memory for tpu_custom_call.1']
    #allocation4 [shape = 's32[1]{0}', space=sflag, size = 0x4, scoped, tag = 'scoped memory for tpu_custom_call.1']
    #allocation5 [shape = 'u8[65536]{0}', space=vmem, size = 0x10000, scoped, tag = 'input window, operand 1, single buffered']
    #allocation6 [shape = 's32[1]{0}', space=sflag, size = 0x4, scoped, tag = 'scoped memory for tpu_custom_call.1']
    #allocation7 [shape = 'u8[4096]{0}', space=vmem, size = 0x1000, scoped, tag = 'output window, operand 0, single buffered']
    %8 = vsyncpa [#allocation3], 0
    %9 = vsyncpa [#allocation6], 0
    %10 = vsyncpa [#allocation4], 0
    // Predicated region
    $region2: #{tpu_custom_call.1} parent=1 // pred_check
      _
    $region3: #{tpu_custom_call.1} parent=1 // pred_check_branch
      %12 = sbr.rel (0) target = $region5
    $region4: #{tpu_custom_call.1} parent=1 // pred_region
      %s14 = ssub.s32 128, 128
      %15 = vsyncadd [#allocation3], %s14
      %s17 = sshll.u32 [#allocation2], 4
      %s18 = int_to_ptr.vmem [resolvable:$true] %s17
      %20 = dma.hbm_to_vmem [thread:$0]  %s0, 128, %s18, [#allocation3]
    $region5: #{tpu_custom_call.1} parent=1 // pred_fallthru
      _
    // Predicated region
    $region6: #{tpu_custom_call.1} parent=1 // pred_check
      _
    $region7: #{tpu_custom_call.1} parent=1 // pred_check_branch
      %22 = sbr.rel (0) target = $region9
    $region8: #{tpu_custom_call.1} parent=1 // pred_region
      %s24 = ssub.s32 2048, 2048
      %25 = vsyncadd [#allocation6], %s24
      %s26 = sshll.u32 [#allocation5], 4
      %s27 = int_to_ptr.vmem [resolvable:$true] %s26
      %32 = dma.hbm_to_vmem [thread:$0]  %s1, 2048, %s27, [#allocation6], 128, 128, 8
    $region9: #{tpu_custom_call.1} parent=1 // pred_fallthru
      _
    // Predicated region
    $region10: #{tpu_custom_call.1} parent=1 // pred_check
      _
    $region11: #{tpu_custom_call.1} parent=1 // pred_check_branch
      %34 = sbr.rel (0) target = $region13
    $region12: #{tpu_custom_call.1} parent=1 // pred_region
      _
    $region13: #{tpu_custom_call.1} parent=1 // pred_fallthru
      _
    // Predicated region
    $region14: #{tpu_custom_call.1} parent=1 // pred_check
      _
    $region15: #{tpu_custom_call.1} parent=1 // pred_check_branch
      %36 = sbr.rel (0) target = $region17
    $region16: #{tpu_custom_call.1} parent=1 // pred_region
      %37 = dma.done [#allocation3], 128
    $region17: #{tpu_custom_call.1} parent=1 // pred_fallthru
      _
    // Predicated region
    $region18: #{tpu_custom_call.1} parent=1 // pred_check
      _
    $region19: #{tpu_custom_call.1} parent=1 // pred_check_branch
      %39 = sbr.rel (0) target = $region21
    $region20: #{tpu_custom_call.1} parent=1 // pred_region
      %40 = dma.done [#allocation6], 2048
    $region21: #{tpu_custom_call.1} parent=1 // pred_fallthru
      _
    %v42 = vld [vmem:[#allocation2] sm:$0xff]
    %v43 = vpack.c.bf16 %v42, %v42
    %v44 = vld [vmem:[#allocation5] sm:$0xff]
    %v45 = vld [vmem:[#allocation5 + $0x8] sm:$0xff]
    %v46 = vld [vmem:[#allocation5 + $0x10] sm:$0xff]
    %v47 = vld [vmem:[#allocation5 + $0x18] sm:$0xff]
    %v48 = vld [vmem:[#allocation5 + $0x20] sm:$0xff]
    %v49 = vld [vmem:[#allocation5 + $0x28] sm:$0xff]
    %v50 = vld [vmem:[#allocation5 + $0x30] sm:$0xff]
    %v51 = vld [vmem:[#allocation5 + $0x38] sm:$0xff]
    %v52 = vld [vmem:[#allocation5 + $0x40] sm:$0xff]
    %v53 = vld [vmem:[#allocation5 + $0x48] sm:$0xff]
    %v54 = vld [vmem:[#allocation5 + $0x50] sm:$0xff]
    %v55 = vld [vmem:[#allocation5 + $0x58] sm:$0xff]
    %v56 = vld [vmem:[#allocation5 + $0x60] sm:$0xff]
    %v57 = vld [vmem:[#allocation5 + $0x68] sm:$0xff]
    %v58 = vld [vmem:[#allocation5 + $0x70] sm:$0xff]
    %v59 = vld [vmem:[#allocation5 + $0x78] sm:$0xff]
    %v60 = vld [vmem:[%s2] sm:$0x3]
    %v62 = vlaneseq
    %v63 = vshrl.u32 %v62, 7
    %v64 = vsub.s32 0, %v63
    %v65 = vrot.slane %v60, %v64
    %v66 = vlaneseq
    %v67 = vshrl.u32 %v66, 7
    %v68 = vsub.s32 1, %v67
    %v69 = vrot.slane %v60, %v68
    %v88 = vunpack.c.l.b16 %v44
    %v89 = vunpack.c.h.b16 %v44
    %v90 = vunpack.c.l.b16 %v45
    %v91 = vunpack.c.h.b16 %v45
    %v92 = vunpack.c.l.b16 %v46
    %v93 = vunpack.c.h.b16 %v46
    %v94 = vunpack.c.l.b16 %v47
    %v95 = vunpack.c.h.b16 %v47
    %v96 = vunpack.c.l.b16 %v48
    %v97 = vunpack.c.h.b16 %v48
    %v98 = vunpack.c.l.b16 %v49
    %v99 = vunpack.c.h.b16 %v49
    %v100 = vunpack.c.l.b16 %v50
    %v101 = vunpack.c.h.b16 %v50
    %v102 = vunpack.c.l.b16 %v51
    %v103 = vunpack.c.h.b16 %v51
    %v104 = vunpack.c.l.b16 %v52
    %v105 = vunpack.c.h.b16 %v52
    %v106 = vunpack.c.l.b16 %v53
    %v107 = vunpack.c.h.b16 %v53
    %v108 = vunpack.c.l.b16 %v54
    %v109 = vunpack.c.h.b16 %v54
    %v110 = vunpack.c.l.b16 %v55
    %v111 = vunpack.c.h.b16 %v55
    %v112 = vunpack.c.l.b16 %v56
    %v113 = vunpack.c.h.b16 %v56
    %v114 = vunpack.c.l.b16 %v57
    %v115 = vunpack.c.h.b16 %v57
    %v116 = vunpack.c.l.b16 %v58
    %v117 = vunpack.c.h.b16 %v58
    %v118 = vunpack.c.l.b16 %v59
    %v119 = vunpack.c.h.b16 %v59
    %v120 = vpack.c.b16 %v90, %v88
    %v121 = vpack.c.b16 %v91, %v89
    %v122 = vpack.c.b16 %v94, %v92
    %v123 = vpack.c.b16 %v95, %v93
    %v124 = vpack.c.b16 %v98, %v96
    %v125 = vpack.c.b16 %v99, %v97
    %v126 = vpack.c.b16 %v102, %v100
    %v127 = vpack.c.b16 %v103, %v101
    %v128 = vpack.c.b16 %v106, %v104
    %v129 = vpack.c.b16 %v107, %v105
    %v130 = vpack.c.b16 %v110, %v108
    %v131 = vpack.c.b16 %v111, %v109
    %v132 = vpack.c.b16 %v114, %v112
    %v133 = vpack.c.b16 %v115, %v113
    %v134 = vpack.c.b16 %v118, %v116
    %v135 = vpack.c.b16 %v119, %v117
    %152 = vmatprep.subr.bf16.mxu0 %v135
    %153 = vmatpush1.bf16.msra.mxu0 %v134
    %154 = vmatprep.subr.bf16.mxu0 %v133
    %155 = vmatpush1.bf16.msra.mxu0 %v132
    %156 = vmatprep.subr.bf16.mxu0 %v131
    %157 = vmatpush1.bf16.msra.mxu0 %v130
    %158 = vmatprep.subr.bf16.mxu0 %v129
    %159 = vmatpush1.bf16.msra.mxu0 %v128
    %160 = vmatprep.subr.bf16.mxu0 %v127
    %161 = vmatpush1.bf16.msra.mxu0 %v126
    %162 = vmatprep.subr.bf16.mxu0 %v125
    %163 = vmatpush1.bf16.msra.mxu0 %v124
    %164 = vmatprep.subr.bf16.mxu0 %v123
    %165 = vmatpush1.bf16.msra.mxu0 %v122
    %166 = vmatprep.subr.bf16.mxu0 %v121
    %167 = vmatpush1.bf16.msra.mxu0 %v120
    %168 = vmatprep.subr.bf16.mxu0 0
    %169 = vmatpush2.bf16.msra.mxu0 0
    %170 = vmatprep.subr.bf16.mxu0 0
    %171 = vmatpush2.bf16.msra.mxu0 0
    %172 = vmatprep.subr.bf16.mxu0 0
    %173 = vmatpush2.bf16.msra.mxu0 0
    %174 = vmatprep.subr.bf16.mxu0 0
    %175 = vmatpush2.bf16.msra.mxu0 0
    %176 = vmatprep.subr.bf16.mxu0 0
    %177 = vmatpush2.bf16.msra.mxu0 0
    %178 = vmatprep.subr.bf16.mxu0 0
    %179 = vmatpush2.bf16.msra.mxu0 0
    %180 = vmatprep.subr.bf16.mxu0 0
    %181 = vmatpush2.bf16.msra.mxu0 0
    %182 = vmatprep.subr.bf16.mxu0 0
    %183 = vmatpush2.bf16.msra.mxu0 0
    %184 = vmatprep.mubr.bf16.mxu0 0
    %185 = vmatmul.mubr.bf16.gmra.mxu0 %v43
    %v186 = vpop.f32.mrf.mxu0
    %v187 = vadd.f32 %v65, %v186
    %v188 = vpop.f32.mrf.mxu0
    %v189 = vadd.f32 %v69, %v188
    %v190 = vpop.f32.mrf.mxu0
    %v191 = vpop.f32.mrf.mxu0
    %192 = vdwg.mxu0
    %v193 = vmax.f32 %v187, 0.0
    %v194 = vxor.u32 %v189, 2147483648
    %v195 = vmul.f32 %v194, 1.442695
    %v196 = vpow.pop %v195
    %v197 = vadd.f32 %v196, 1.0
    %v198 = vrcp.pop %v197
    %v199 = vmul.f32 1.0, %v198
    %s200 = smul.u32 0, 128
    %s201 = sshra.s32 %s200, 7
    %s202 = sand.u32 %s200, 127
    %s203 = scalar_lea.vmem [#allocation2], %s201
    %v204 = vld [vmem:[%s203] sm:$0xff]
    %v205 = vsub.f32 %v193, %v204
    %v206 = vmul.f32 %v199, %v205
    %v207 = vadd.f32 %v204, %v206
    %208 = vst [vmem:[#allocation7] sm:$0xff] %v207
    // Predicated region
    $region22: #{tpu_custom_call.1} parent=1 // pred_check
      _
    $region23: #{tpu_custom_call.1} parent=1 // pred_check_branch
      %210 = sbr.rel (0) target = $region25
    $region24: #{tpu_custom_call.1} parent=1 // pred_region
      %s212 = ssub.s32 128, 128
      %213 = vsyncadd [#allocation4], %s212
      %s215 = sshll.u32 [#allocation7], 4
      %s216 = int_to_ptr.vmem [resolvable:$true] %s215
      %218 = dma.vmem_to_hbm [thread:$0]  %s216, 128, %s3, [#allocation4]
    $region25: #{tpu_custom_call.1} parent=1 // pred_fallthru
      _
    // Predicated region
    $region26: #{tpu_custom_call.1} parent=1 // pred_check
      _
    $region27: #{tpu_custom_call.1} parent=1 // pred_check_branch
      %220 = sbr.rel (0) target = $region29
    $region28: #{tpu_custom_call.1} parent=1 // pred_region
      %221 = dma.done [#allocation4], 128
    $region29: #{tpu_custom_call.1} parent=1 // pred_fallthru
      _
    %222 = vsyncpa [#allocation3], 1
    %223 = vsyncpa [#allocation6], 1
    %224 = vsyncpa [#allocation4], 1

// kernel: tpu_custom_call.1
$region0: #{tpu_custom_call.1}
  #allocation0 [shape = 'u32[]', space=smem, size = 0x4, offset = 0x4, fixed_abs, tag = 'smem constant byte address 0x4 - core index']
  #allocation1 [shape = 'u32[144,128]{1,0:T(1,128)}', space=vmem, size = 0x12000, scoped, tag = 'internal scratch']
  %s0 = inlined_call_operand.hbm [shape: f32[8,128], index: 0, kind: input, shape index: {}]
  %s1 = inlined_call_operand.hbm [shape: bf16[128,256], index: 1, kind: input, shape index: {}]
  %s2 = inlined_call_operand.vmem [shape: f32[1,256], index: 2, kind: input, shape index: {}]
  %s3 = inlined_call_operand.hbm [shape: f32[8,128], index: 3, kind: output, shape index: {}]
  %s4 = sld [smem:[#allocation0]]
  $region30: #{tpu_custom_call.1} parent=0
    _
  %s6 = ssub.s32 1, %s4
  %s7 = scalar_select 0, %s6, %s4
  $region1: #{tpu_custom_call.1} parent=0
    #allocation2 [shape = 'u8[4096]{0}', space=vmem, size = 0x1000, scoped, tag = 'input window, operand 0, single buffered']
    #allocation3 [shape = 's32[1]{0}', space=sflag, size = 0x4, scoped, tag = 'scoped memory for tpu_custom_call.1']
    #allocation4 [shape = 's32[1]{0}', space=sflag, size = 0x4, scoped, tag = 'scoped memory for tpu_custom_call.1']
    #allocation5 [shape = 'u8[65536]{0}', space=vmem, size = 0x10000, scoped, tag = 'input window, operand 1, single buffered']
    #allocation6 [shape = 's32[1]{0}', space=sflag, size = 0x4, scoped, tag = 'scoped memory for tpu_custom_call.1']
    #allocation7 [shape = 'u8[4096]{0}', space=vmem, size = 0x1000, scoped, tag = 'output window, operand 0, single buffered']
    %8 = vsyncpa [#allocation3], 0
    %9 = vsyncpa [#allocation6], 0
    %10 = vsyncpa [#allocation4], 0
    // Predicated region
    $region2: #{tpu_custom_call.1} parent=1 // pred_check
      _
    $region3: #{tpu_custom_call.1} parent=1 // pred_check_branch
      %12 = sbr.rel (0) target = $region5
    $region4: #{tpu_custom_call.1} parent=1 // pred_region
      %s14 = ssub.s32 128, 128
      %15 = vsyncadd [#allocation3], %s14
      %s17 = sshll.u32 [#allocation2], 4
      %s18 = int_to_ptr.vmem [resolvable:$true] %s17
      %20 = dma.hbm_to_vmem [thread:$0]  %s0, 128, %s18, [#allocation3]
    $region5: #{tpu_custom_call.1} parent=1 // pred_fallthru
      _
    // Predicated region
    $region6: #{tpu_custom_call.1} parent=1 // pred_check
      _
    $region7: #{tpu_custom_call.1} parent=1 // pred_check_branch
      %22 = sbr.rel (0) target = $region9
    $region8: #{tpu_custom_call.1} parent=1 // pred_region
      %s24 = ssub.s32 2048, 2048
      %25 = vsyncadd [#allocation6], %s24
      %s26 = sshll.u32 [#allocation5], 4
      %s27 = int_to_ptr.vmem [resolvable:$true] %s26
      %32 = dma.hbm_to_vmem [thread:$0]  %s1, 2048, %s27, [#allocation6], 128, 128, 8
    $region9: #{tpu_custom_call.1} parent=1 // pred_fallthru
      _
    // Predicated region
    $region10: #{tpu_custom_call.1} parent=1 // pred_check
      _
    $region11: #{tpu_custom_call.1} parent=1 // pred_check_branch
      %34 = sbr.rel (0) target = $region13
    $region12: #{tpu_custom_call.1} parent=1 // pred_region
      _
    $region13: #{tpu_custom_call.1} parent=1 // pred_fallthru
      _
    // Predicated region
    $region14: #{tpu_custom_call.1} parent=1 // pred_check
      _
    $region15: #{tpu_custom_call.1} parent=1 // pred_check_branch
      %36 = sbr.rel (0) target = $region17
    $region16: #{tpu_custom_call.1} parent=1 // pred_region
      %37 = dma.done [#allocation3], 128
    $region17: #{tpu_custom_call.1} parent=1 // pred_fallthru
      _
    // Predicated region
    $region18: #{tpu_custom_call.1} parent=1 // pred_check
      _
    $region19: #{tpu_custom_call.1} parent=1 // pred_check_branch
      %39 = sbr.rel (0) target = $region21
    $region20: #{tpu_custom_call.1} parent=1 // pred_region
      %40 = dma.done [#allocation6], 2048
    $region21: #{tpu_custom_call.1} parent=1 // pred_fallthru
      _
    %v42 = vld [vmem:[#allocation2] sm:$0xff]
    %v43 = vpack.c.bf16 %v42, %v42
    %v44 = vld [vmem:[#allocation5] sm:$0xff]
    %v45 = vld [vmem:[#allocation5 + $0x8] sm:$0xff]
    %v46 = vld [vmem:[#allocation5 + $0x10] sm:$0xff]
    %v47 = vld [vmem:[#allocation5 + $0x18] sm:$0xff]
    %v48 = vld [vmem:[#allocation5 + $0x20] sm:$0xff]
    %v49 = vld [vmem:[#allocation5 + $0x28] sm:$0xff]
    %v50 = vld [vmem:[#allocation5 + $0x30] sm:$0xff]
    %v51 = vld [vmem:[#allocation5 + $0x38] sm:$0xff]
    %v52 = vld [vmem:[#allocation5 + $0x40] sm:$0xff]
    %v53 = vld [vmem:[#allocation5 + $0x48] sm:$0xff]
    %v54 = vld [vmem:[#allocation5 + $0x50] sm:$0xff]
    %v55 = vld [vmem:[#allocation5 + $0x58] sm:$0xff]
    %v56 = vld [vmem:[#allocation5 + $0x60] sm:$0xff]
    %v57 = vld [vmem:[#allocation5 + $0x68] sm:$0xff]
    %v58 = vld [vmem:[#allocation5 + $0x70] sm:$0xff]
    %v59 = vld [vmem:[#allocation5 + $0x78] sm:$0xff]
    %v60 = vld [vmem:[%s2] sm:$0x3]
    %v62 = vlaneseq
    %v63 = vshrl.u32 %v62, 7
    %v64 = vsub.s32 0, %v63
    %v65 = vrot.slane %v60, %v64
    %v66 = vlaneseq
    %v67 = vshrl.u32 %v66, 7
    %v68 = vsub.s32 1, %v67
    %v69 = vrot.slane %v60, %v68
    %v88 = vunpack.c.l.b16 %v44
    %v89 = vunpack.c.h.b16 %v44
    %v90 = vunpack.c.l.b16 %v45
    %v91 = vunpack.c.h.b16 %v45
    %v92 = vunpack.c.l.b16 %v46
    %v93 = vunpack.c.h.b16 %v46
    %v94 = vunpack.c.l.b16 %v47
    %v95 = vunpack.c.h.b16 %v47
    %v96 = vunpack.c.l.b16 %v48
    %v97 = vunpack.c.h.b16 %v48
    %v98 = vunpack.c.l.b16 %v49
    %v99 = vunpack.c.h.b16 %v49
    %v100 = vunpack.c.l.b16 %v50
    %v101 = vunpack.c.h.b16 %v50
    %v102 = vunpack.c.l.b16 %v51
    %v103 = vunpack.c.h.b16 %v51
    %v104 = vunpack.c.l.b16 %v52
    %v105 = vunpack.c.h.b16 %v52
    %v106 = vunpack.c.l.b16 %v53
    %v107 = vunpack.c.h.b16 %v53
    %v108 = vunpack.c.l.b16 %v54
    %v109 = vunpack.c.h.b16 %v54
    %v110 = vunpack.c.l.b16 %v55
    %v111 = vunpack.c.h.b16 %v55
    %v112 = vunpack.c.l.b16 %v56
    %v113 = vunpack.c.h.b16 %v56
    %v114 = vunpack.c.l.b16 %v57
    %v115 = vunpack.c.h.b16 %v57
    %v116 = vunpack.c.l.b16 %v58
    %v117 = vunpack.c.h.b16 %v58
    %v118 = vunpack.c.l.b16 %v59
    %v119 = vunpack.c.h.b16 %v59
    %v120 = vpack.c.b16 %v90, %v88
    %v121 = vpack.c.b16 %v91, %v89
    %v122 = vpack.c.b16 %v94, %v92
    %v123 = vpack.c.b16 %v95, %v93
    %v124 = vpack.c.b16 %v98, %v96
    %v125 = vpack.c.b16 %v99, %v97
    %v126 = vpack.c.b16 %v102, %v100
    %v127 = vpack.c.b16 %v103, %v101
    %v128 = vpack.c.b16 %v106, %v104
    %v129 = vpack.c.b16 %v107, %v105
    %v130 = vpack.c.b16 %v110, %v108
    %v131 = vpack.c.b16 %v111, %v109
    %v132 = vpack.c.b16 %v114, %v112
    %v133 = vpack.c.b16 %v115, %v113
    %v134 = vpack.c.b16 %v118, %v116
    %v135 = vpack.c.b16 %v119, %v117
    %152 = vmatprep.subr.bf16.mxu0 %v135
    %153 = vmatpush1.bf16.msra.mxu0 %v134
    %154 = vmatprep.subr.bf16.mxu0 %v133
    %155 = vmatpush1.bf16.msra.mxu0 %v132
    %156 = vmatprep.subr.bf16.mxu0 %v131
    %157 = vmatpush1.bf16.msra.mxu0 %v130
    %158 = vmatprep.subr.bf16.mxu0 %v129
    %159 = vmatpush1.bf16.msra.mxu0 %v128
    %160 = vmatprep.subr.bf16.mxu0 %v127
    %161 = vmatpush1.bf16.msra.mxu0 %v126
    %162 = vmatprep.subr.bf16.mxu0 %v125
    %163 = vmatpush1.bf16.msra.mxu0 %v124
    %164 = vmatprep.subr.bf16.mxu0 %v123
    %165 = vmatpush1.bf16.msra.mxu0 %v122
    %166 = vmatprep.subr.bf16.mxu0 %v121
    %167 = vmatpush1.bf16.msra.mxu0 %v120
    %168 = vmatprep.subr.bf16.mxu0 0
    %169 = vmatpush2.bf16.msra.mxu0 0
    %170 = vmatprep.subr.bf16.mxu0 0
    %171 = vmatpush2.bf16.msra.mxu0 0
    %172 = vmatprep.subr.bf16.mxu0 0
    %173 = vmatpush2.bf16.msra.mxu0 0
    %174 = vmatprep.subr.bf16.mxu0 0
    %175 = vmatpush2.bf16.msra.mxu0 0
    %176 = vmatprep.subr.bf16.mxu0 0
    %177 = vmatpush2.bf16.msra.mxu0 0
    %178 = vmatprep.subr.bf16.mxu0 0
    %179 = vmatpush2.bf16.msra.mxu0 0
    %180 = vmatprep.subr.bf16.mxu0 0
    %181 = vmatpush2.bf16.msra.mxu0 0
    %182 = vmatprep.subr.bf16.mxu0 0
    %183 = vmatpush2.bf16.msra.mxu0 0
    %184 = vmatprep.mubr.bf16.mxu0 0
    %185 = vmatmul.mubr.bf16.gmra.mxu0 %v43
    %v186 = vpop.f32.mrf.mxu0
    %v187 = vadd.f32 %v65, %v186
    %v188 = vpop.f32.mrf.mxu0
    %v189 = vadd.f32 %v69, %v188
    %v190 = vpop.f32.mrf.mxu0
    %v191 = vpop.f32.mrf.mxu0
    %192 = vdwg.mxu0
    %v193 = vmax.f32 %v187, 0.0
    %v194 = vxor.u32 %v189, 2147483648
    %v195 = vmul.f32 %v194, 1.442695
    %v196 = vpow.pop %v195
    %v197 = vadd.f32 %v196, 1.0
    %v198 = vrcp.pop %v197
    %v199 = vmul.f32 1.0, %v198
    %s200 = smul.u32 0, 128
    %s201 = sshra.s32 %s200, 7
    %s202 = sand.u32 %s200, 127
    %s203 = scalar_lea.vmem [#allocation2], %s201
    %v204 = vld [vmem:[%s203] sm:$0xff]
    %v205 = vsub.f32 %v193, %v204
    %v206 = vmul.f32 %v199, %v205
    %v207 = vadd.f32 %v204, %v206
    %208 = vst [vmem:[#allocation7] sm:$0xff] %v207
    // Predicated region
    $region22: #{tpu_custom_call.1} parent=1 // pred_check
      _
    $region23: #{tpu_custom_call.1} parent=1 // pred_check_branch
      %210 = sbr.rel (0) target = $region25
    $region24: #{tpu_custom_call.1} parent=1 // pred_region
      %s212 = ssub.s32 128, 128
      %213 = vsyncadd [#allocation4], %s212
      %s215 = sshll.u32 [#allocation7], 4
      %s216 = int_to_ptr.vmem [resolvable:$true] %s215
      %218 = dma.vmem_to_hbm [thread:$0]  %s216, 128, %s3, [#allocation4]
    $region25: #{tpu_custom_call.1} parent=1 // pred_fallthru
      _
    // Predicated region
    $region26: #{tpu_custom_call.1} parent=1 // pred_check
      _
    $region27: #{tpu_custom_call.1} parent=1 // pred_check_branch
      %220 = sbr.rel (0) target = $region29
    $region28: #{tpu_custom_call.1} parent=1 // pred_region
      %221 = dma.done [#allocation4], 128
    $region29: #{tpu_custom_call.1} parent=1 // pred_fallthru
      _
    %222 = vsyncpa [#allocation3], 1
    %223 = vsyncpa [#allocation6], 1
    %224 = vsyncpa [#allocation4], 1

</llo_original>
